<compile_context>
chip_gen: v7x
topology: tpu7x:2x2x1
jax: 0.10.0
libtpu: 0.0.40
codegen_flags: <defaults>
</compile_context>

<pallas_src>
import jax
import jax.numpy as jnp
from jax.experimental import pallas as pl
from jax.experimental.pallas import tpu as pltpu


def _round_up(n, m):
    return ((n + m - 1) // m) * m


def fcc_kernel(x_ref, w1_ref, b1_ref, w2_ref, b2_ref, w3_ref, b3_ref, o_ref):
    # Fused 3-layer MLP on one batch tile. MXU matmuls run in the weight dtype
    # (bf16) with f32 accumulation; bias-add + ReLU stay in f32 on the VPU and
    # the downcast is fused into the ReLU epilogue. Dropout = identity (eval).
    # TODO(synk): training-mode dropout (scaled Bernoulli mask) not implemented.
    x = x_ref[...].astype(w1_ref.dtype)                    # in-kernel cast (VPU, free)

    h1 = jnp.dot(x, w1_ref[...], preferred_element_type=jnp.float32)
    h1 = jnp.maximum(h1 + b1_ref[...], 0.0).astype(w2_ref.dtype)   # ReLU + downcast

    h2 = jnp.dot(h1, w2_ref[...], preferred_element_type=jnp.float32)
    h2 = jnp.maximum(h2 + b2_ref[...], 0.0).astype(w3_ref.dtype)   # ReLU + downcast

    out = jnp.dot(h2, w3_ref[...], preferred_element_type=jnp.float32)
    # Bias add + store on the lane-dense padded (tile_b, 128*k) block.
    o_ref[...] = (out + b3_ref[...]).astype(o_ref.dtype)


def prepare_params(params, *, use_bf16=True):
    """One-time parameter prep: cast weights to bf16, biases to f32, and pad
    w3/b3 so the output's last dim is a lane-dense multiple of 128.  Do this
    once (outside the step loop) so no per-call HBM cast/pad passes remain."""
    w1, b1 = params["w1"], params["b1"]
    w2, b2 = params["w2"], params["b2"]
    w3, b3 = params["w3"], params["b3"]
    mlp_dim = w3.shape[1]
    n_pad = _round_up(max(mlp_dim, 128), 128)
    if n_pad != mlp_dim:
        w3 = jnp.pad(w3, ((0, 0), (0, n_pad - mlp_dim)))
        b3 = jnp.pad(b3.reshape(1, -1), ((0, 0), (0, n_pad - mlp_dim)))
    cdt = jnp.bfloat16 if use_bf16 else w1.dtype
    return {
        "w1": w1.astype(cdt), "w2": w2.astype(cdt), "w3": w3.astype(cdt),
        "b1": b1.reshape(1, -1).astype(jnp.float32),
        "b2": b2.reshape(1, -1).astype(jnp.float32),
        "b3": b3.reshape(1, -1).astype(jnp.float32),
        "mlp_dim": int(mlp_dim),
    }


def fcc_forward(x, prep, *, tile_b=512, out_dtype=None):
    """Fused FCC forward.  x: (B, in_features) float32 (cast happens in-kernel).
    `prep` comes from prepare_params().  Returns (B, mlp_dim) in out_dtype
    (default: x.dtype)."""
    w1, b1 = prep["w1"], prep["b1"]
    w2, b2 = prep["w2"], prep["b2"]
    w3, b3 = prep["w3"], prep["b3"]
    M = prep["mlp_dim"]

    B, C_in = x.shape
    H1 = w1.shape[1]
    H2 = w2.shape[1]
    N_pad = w3.shape[1]
    out_dtype = x.dtype if out_dtype is None else out_dtype

    # --- batch tiling ---------------------------------------------------
    # Use the largest tile that makes sense (amortizes per-step overhead and
    # keeps the MXU M-occupancy high), never forcing extra grid steps for a
    # small batch.  For large B the grid has multiple "parallel" blocks, which
    # is exactly when splitting across v7x's two TensorCores pays off.
    row_align = 16
    tile_b = max(row_align, _round_up(min(int(tile_b), B), row_align))
    B_pad = _round_up(B, tile_b)
    if B_pad != B:
        x = jnp.pad(x, ((0, B_pad - B), (0, 0)))
    grid = (B_pad // tile_b,)

    # --- VMEM budget (hardware-derived cap) ------------------------------
    w_isz = jnp.dtype(w1.dtype).itemsize
    x_isz = jnp.dtype(x.dtype).itemsize
    o_isz = jnp.dtype(out_dtype).itemsize
    weight_bytes = (C_in * H1 + H1 * H2 + H2 * N_pad) * w_isz
    bias_bytes = (H1 + H2 + N_pad) * 4
    io_step_bytes = tile_b * C_in * x_isz + tile_b * N_pad * o_isz
    act_bytes = tile_b * (H1 + H2) * (4 + w_isz)      # f32 accum + bf16 ReLU outs
    vmem_need = 2 * io_step_bytes + weight_bytes + bias_bytes + act_bytes

    try:
        vmem_cap = int(pltpu.get_tpu_info().vmem_capacity_bytes)
    except Exception:
        vmem_cap = 64 << 20                           # conservative (v7x per-TC)
    # Resident-weights design: everything must fit comfortably inside VMEM.
    # TODO(synk): K-tiled (reduction-grid) fallback for configs whose weights
    # exceed ~half of VMEM (large H1/H2 on v7x).
    assert vmem_need < vmem_cap // 2, (
        f"FCC weights + activations ({vmem_need} B) too large for resident-"
        f"weight kernel on this chip (VMEM {vmem_cap} B); needs K-tiling.")
    vmem_limit = int(min(max(2 * vmem_need, 8 << 20), vmem_cap - (4 << 20)))

    # --- BlockSpecs -------------------------------------------------------
    # Grid-invariant weight/bias blocks: single-buffer when supported (saves
    # VMEM; they are never re-DMA'd across grid steps anyway).
    if hasattr(pl, "Buffered"):
        def _resident(shape):
            return pl.BlockSpec(shape, lambda i: (0, 0),
                                pipeline_mode=pl.Buffered(1))
    else:  # pragma: no cover - older jax without pipeline_mode
        def _resident(shape):
            return pl.BlockSpec(shape, lambda i: (0, 0))

    cost = pl.CostEstimate(
        flops=2 * B_pad * (C_in * H1 + H1 * H2 + H2 * N_pad),
        transcendentals=0,
        bytes_accessed=int(B_pad * C_in * x_isz + weight_bytes + bias_bytes
                           + B_pad * N_pad * o_isz),
    )

    out_padded = pl.pallas_call(
        fcc_kernel,
        out_shape=jax.ShapeDtypeStruct((B_pad, N_pad), out_dtype),
        grid_spec=pltpu.PrefetchScalarGridSpec(
            num_scalar_prefetch=0,
            grid=grid,
            in_specs=[
                pl.BlockSpec((tile_b, C_in), lambda i: (i, 0)),   # x tile (f32)
                _resident((C_in, H1)),                            # W1 (bf16, resident)
                _resident((1, H1)),                               # b1 (f32)
                _resident((H1, H2)),                              # W2 (bf16, resident)
                _resident((1, H2)),                               # b2 (f32)
                _resident((H2, N_pad)),                           # W3 (bf16, N padded)
                _resident((1, N_pad)),                            # b3 (f32, padded)
            ],
            out_specs=pl.BlockSpec((tile_b, N_pad), lambda i: (i, 0)),
        ),
        compiler_params=pltpu.CompilerParams(
            dimension_semantics=("parallel",),
            vmem_limit_bytes=vmem_limit,
        ),
        cost_estimate=cost,
    )(x, w1, b1, w2, b2, w3, b3)

    # Note: for very large B a bf16 out_dtype and fusing this slice into the
    # consumer removes the remaining writeback/read-back overhead.
    return out_padded[:B, :M]


def init_params(key, in_channels, out_channels, mlp_dim, scaling_factor):
    """Deterministic init matching the FCC layer shapes (stored as (in, out))."""
    h1 = out_channels * scaling_factor
    h2 = out_channels * scaling_factor // 2
    k1, k2, k3, k4, k5, k6 = jax.random.split(key, 6)

    def uinit(k, shape, fan_in):
        bound = 1.0 / jnp.sqrt(fan_in)
        return jax.random.uniform(k, shape, jnp.float32, -bound, bound)

    return {
        "w1": uinit(k1, (in_channels, h1), in_channels),
        "b1": uinit(k2, (1, h1), in_channels),
        "w2": uinit(k3, (h1, h2), h1),
        "b2": uinit(k4, (1, h2), h1),
        "w3": uinit(k5, (h2, mlp_dim), h2),
        "b3": uinit(k6, (1, mlp_dim), h2),
    }


def fcc_reference(x, p):
    h1 = jnp.maximum(x @ p["w1"] + p["b1"], 0.0)
    h2 = jnp.maximum(h1 @ p["w2"] + p["b2"], 0.0)
    return h2 @ p["w3"] + p["b3"]


if __name__ == "__main__":
    # Small shapes consistent with the module:
    #   in_channels=64, out_channels=16, scaling_factor=16 -> hidden 256 / 128,
    #   mlp_dim=3, batch=32.
    in_channels = 64
    out_channels = 16
    scaling_factor = 16
    mlp_dim = 3
    batch = 32

    key = jax.random.PRNGKey(0)
    kx, kp = jax.random.split(key)
    x = jax.random.normal(kx, (batch, in_channels), jnp.float32)
    params = init_params(kp, in_channels, out_channels, mlp_dim, scaling_factor)

    prep = prepare_params(params, use_bf16=True)     # one-time cast/pad
    out = fcc_forward(x, prep)
    out = jax.block_until_ready(out)

    ref = fcc_reference(x, params)
    assert out.shape == (batch, mlp_dim)
    # bf16 MXU operands (f32 accumulate) -> looser tolerance than pure f32.
    assert jnp.allclose(out, ref, atol=5e-2, rtol=5e-2), "mismatch vs reference"

    print("KERNEL_OK")
</pallas_src>

<mosaic_0001>
module attributes {stable_mosaic.version = 11 : i64} {
  func.func @fcc_kernel(%arg0: i32, %arg1: memref<32x64xf32, #tpu.memory_space<vmem>>, %arg2: memref<64x256xbf16, #tpu.memory_space<vmem>>, %arg3: memref<1x256xf32, #tpu.memory_space<vmem>>, %arg4: memref<256x128xbf16, #tpu.memory_space<vmem>>, %arg5: memref<1x128xf32, #tpu.memory_space<vmem>>, %arg6: memref<128x128xbf16, #tpu.memory_space<vmem>>, %arg7: memref<1x128xf32, #tpu.memory_space<vmem>>, %arg8: memref<32x128xf32, #tpu.memory_space<vmem>>) attributes {dimension_semantics = [#tpu.dimension_semantics<parallel>], iteration_bounds = array<i64: 1>, scalar_prefetch = 0 : i64, scratch_operands = 0 : i64, tpu.core_type = #tpu.core_type<tc>, window_params = [{transform_indices = @transform_0, window_bounds = array<i64: 32, 64>}, {pipeline_mode = #tpu.pipeline_mode<synchronous>, transform_indices = @transform_1, window_bounds = array<i64: 64, 256>}, {pipeline_mode = #tpu.pipeline_mode<synchronous>, transform_indices = @transform_2, window_bounds = array<i64: 1, 256>}, {pipeline_mode = #tpu.pipeline_mode<synchronous>, transform_indices = @transform_3, window_bounds = array<i64: 256, 128>}, {pipeline_mode = #tpu.pipeline_mode<synchronous>, transform_indices = @transform_4, window_bounds = array<i64: 1, 128>}, {pipeline_mode = #tpu.pipeline_mode<synchronous>, transform_indices = @transform_5, window_bounds = array<i64: 128, 128>}, {pipeline_mode = #tpu.pipeline_mode<synchronous>, transform_indices = @transform_6, window_bounds = array<i64: 1, 128>}, {transform_indices = @transform_7, window_bounds = array<i64: 32, 128>}]} {
    %c0 = arith.constant 0 : index
    %c0_0 = arith.constant 0 : index
    %0 = vector.load %arg1[%c0, %c0_0] : memref<32x64xf32, #tpu.memory_space<vmem>>, vector<32x64xf32>
    %1 = arith.truncf %0 : vector<32x64xf32> to vector<32x64xbf16>
    %c0_1 = arith.constant 0 : index
    %c0_2 = arith.constant 0 : index
    %2 = vector.load %arg2[%c0_1, %c0_2] : memref<64x256xbf16, #tpu.memory_space<vmem>>, vector<64x256xbf16>
    %cst = arith.constant dense<0.000000e+00> : vector<32x256xf32>
    %3 = tpu.matmul %1, %2, %cst {dimension_numbers = #tpu.dot_dimension_numbers<[1], [0], [0], [1], [0, 0, 1, 1], [], []>} : vector<32x64xbf16>, vector<64x256xbf16>, vector<32x256xf32> -> vector<32x256xf32>
    %c0_3 = arith.constant 0 : index
    %c0_4 = arith.constant 0 : index
    %4 = vector.load %arg3[%c0_3, %c0_4] : memref<1x256xf32, #tpu.memory_space<vmem>>, vector<1x256xf32>
    %5 = vector.broadcast %4 : vector<1x256xf32> to vector<32x256xf32>
    %6 = arith.addf %3, %5 : vector<32x256xf32>
    %cst_5 = arith.constant 0.000000e+00 : f32
    %7 = vector.broadcast %cst_5 : f32 to vector<32x256xf32>
    %8 = arith.maximumf %6, %7 : vector<32x256xf32>
    %9 = arith.truncf %8 : vector<32x256xf32> to vector<32x256xbf16>
    %c0_6 = arith.constant 0 : index
    %c0_7 = arith.constant 0 : index
    %10 = vector.load %arg4[%c0_6, %c0_7] : memref<256x128xbf16, #tpu.memory_space<vmem>>, vector<256x128xbf16>
    %cst_8 = arith.constant dense<0.000000e+00> : vector<32x128xf32>
    %11 = tpu.matmul %9, %10, %cst_8 {dimension_numbers = #tpu.dot_dimension_numbers<[1], [0], [0], [1], [0, 0, 1, 1], [], []>} : vector<32x256xbf16>, vector<256x128xbf16>, vector<32x128xf32> -> vector<32x128xf32>
    %c0_9 = arith.constant 0 : index
    %c0_10 = arith.constant 0 : index
    %12 = vector.load %arg5[%c0_9, %c0_10] : memref<1x128xf32, #tpu.memory_space<vmem>>, vector<1x128xf32>
    %13 = vector.broadcast %12 : vector<1x128xf32> to vector<32x128xf32>
    %14 = arith.addf %11, %13 : vector<32x128xf32>
    %cst_11 = arith.constant 0.000000e+00 : f32
    %15 = vector.broadcast %cst_11 : f32 to vector<32x128xf32>
    %16 = arith.maximumf %14, %15 : vector<32x128xf32>
    %17 = arith.truncf %16 : vector<32x128xf32> to vector<32x128xbf16>
    %c0_12 = arith.constant 0 : index
    %c0_13 = arith.constant 0 : index
    %18 = vector.load %arg6[%c0_12, %c0_13] : memref<128x128xbf16, #tpu.memory_space<vmem>>, vector<128x128xbf16>
    %cst_14 = arith.constant dense<0.000000e+00> : vector<32x128xf32>
    %19 = tpu.matmul %17, %18, %cst_14 {dimension_numbers = #tpu.dot_dimension_numbers<[1], [0], [0], [1], [0, 0, 1, 1], [], []>} : vector<32x128xbf16>, vector<128x128xbf16>, vector<32x128xf32> -> vector<32x128xf32>
    %c0_15 = arith.constant 0 : index
    %c0_16 = arith.constant 0 : index
    %20 = vector.load %arg7[%c0_15, %c0_16] : memref<1x128xf32, #tpu.memory_space<vmem>>, vector<1x128xf32>
    %21 = vector.broadcast %20 : vector<1x128xf32> to vector<32x128xf32>
    %22 = arith.addf %19, %21 : vector<32x128xf32>
    %c0_17 = arith.constant 0 : index
    %c0_18 = arith.constant 0 : index
    %23 = vector.load %arg8[%c0_17, %c0_18] : memref<32x128xf32, #tpu.memory_space<vmem>>, vector<32x128xf32>
    tpu.vector_store %arg8[%c0_17, %c0_18], %22 {strides = array<i32>} : memref<32x128xf32, #tpu.memory_space<vmem>>, vector<32x128xf32>,
    return
  }
  func.func @transform_0(%arg0: i32) -> (i32, i32) {
    %c0_i32 = arith.constant 0 : i32
    %c0_i32_0 = arith.constant 0 : i32
    return %arg0, %c0_i32 : i32, i32
  }
  func.func @transform_1(%arg0: i32) -> (i32, i32) {
    %c0_i32 = arith.constant 0 : i32
    %c0_i32_0 = arith.constant 0 : i32
    %c0_i32_1 = arith.constant 0 : i32
    return %c0_i32, %c0_i32_0 : i32, i32
  }
  func.func @transform_2(%arg0: i32) -> (i32, i32) {
    %c0_i32 = arith.constant 0 : i32
    %c0_i32_0 = arith.constant 0 : i32
    %c0_i32_1 = arith.constant 0 : i32
    return %c0_i32, %c0_i32_0 : i32, i32
  }
  func.func @transform_3(%arg0: i32) -> (i32, i32) {
    %c0_i32 = arith.constant 0 : i32
    %c0_i32_0 = arith.constant 0 : i32
    %c0_i32_1 = arith.constant 0 : i32
    return %c0_i32, %c0_i32_0 : i32, i32
  }
  func.func @transform_4(%arg0: i32) -> (i32, i32) {
    %c0_i32 = arith.constant 0 : i32
    %c0_i32_0 = arith.constant 0 : i32
    %c0_i32_1 = arith.constant 0 : i32
    return %c0_i32, %c0_i32_0 : i32, i32
  }
  func.func @transform_5(%arg0: i32) -> (i32, i32) {
    %c0_i32 = arith.constant 0 : i32
    %c0_i32_0 = arith.constant 0 : i32
    %c0_i32_1 = arith.constant 0 : i32
    return %c0_i32, %c0_i32_0 : i32, i32
  }
  func.func @transform_6(%arg0: i32) -> (i32, i32) {
    %c0_i32 = arith.constant 0 : i32
    %c0_i32_0 = arith.constant 0 : i32
    %c0_i32_1 = arith.constant 0 : i32
    return %c0_i32, %c0_i32_0 : i32, i32
  }
  func.func @transform_7(%arg0: i32) -> (i32, i32) {
    %c0_i32 = arith.constant 0 : i32
    %c0_i32_0 = arith.constant 0 : i32
    return %arg0, %c0_i32 : i32, i32
  }
}

</mosaic_0001>

<llo_original>
// kernel: tpu_custom_call.1
$region0: #{tpu_custom_call.1}
  #allocation0 [shape = 'u32[]', space=smem, size = 0x4, offset = 0x4, fixed_abs, tag = 'smem constant byte address 0x4 - core index']
  #allocation1 [shape = 'u32[144,128]{1,0:T(1,128)}', space=vmem, size = 0x12000, scoped, tag = 'internal scratch']
  %s0 = inlined_call_operand.hbm [shape: f32[32,64], index: 0, kind: input, shape index: {}]
  %s1 = inlined_call_operand.hbm [shape: bf16[64,256], index: 1, kind: input, shape index: {}]
  %s2 = inlined_call_operand.vmem [shape: f32[1,256], index: 2, kind: input, shape index: {}]
  %s3 = inlined_call_operand.hbm [shape: bf16[256,128], index: 3, kind: input, shape index: {}]
  %s4 = inlined_call_operand.vmem [shape: f32[1,128], index: 4, kind: input, shape index: {}]
  %s5 = inlined_call_operand.hbm [shape: bf16[128,128], index: 5, kind: input, shape index: {}]
  %s6 = inlined_call_operand.vmem [shape: f32[1,128], index: 6, kind: input, shape index: {}]
  %s7 = inlined_call_operand.hbm [shape: f32[32,128], index: 7, kind: output, shape index: {}]
  %s8 = sld [smem:[#allocation0]]
  $region54: #{tpu_custom_call.1} parent=0
    _
  %s10 = ssub.s32 1, %s8
  %s11 = scalar_select 0, %s10, %s8
  $region1: #{tpu_custom_call.1} parent=0
    #allocation2 [shape = 'u8[16384]{0}', space=vmem, size = 0x4000, scoped, tag = 'input window, operand 0, single buffered']
    #allocation3 [shape = 's32[1]{0}', space=sflag, size = 0x4, scoped, tag = 'scoped memory for tpu_custom_call.1']
    #allocation4 [shape = 's32[1]{0}', space=sflag, size = 0x4, scoped, tag = 'scoped memory for tpu_custom_call.1']
    #allocation5 [shape = 'u8[32768]{0}', space=vmem, size = 0x8000, scoped, tag = 'input window, operand 1, single buffered']
    #allocation6 [shape = 's32[1]{0}', space=sflag, size = 0x4, scoped, tag = 'scoped memory for tpu_custom_call.1']
    #allocation7 [shape = 'u8[65536]{0}', space=vmem, size = 0x10000, scoped, tag = 'input window, operand 3, single buffered']
    #allocation8 [shape = 'u8[32768]{0}', space=vmem, size = 0x8000, scoped, tag = 'input window, operand 5, single buffered']
    #allocation9 [shape = 's32[1]{0}', space=sflag, size = 0x4, scoped, tag = 'scoped memory for tpu_custom_call.1']
    #allocation10 [shape = 'u8[16384]{0}', space=vmem, size = 0x4000, scoped, tag = 'output window, operand 0, single buffered']
    %12 = vsyncpa [#allocation3], 0
    %13 = vsyncpa [#allocation6], 0
    %14 = vsyncpa [#allocation9], 0
    %15 = vsyncpa [#allocation4], 0
    // Predicated region
    $region2: #{tpu_custom_call.1} parent=1 // pred_check
      _
    $region3: #{tpu_custom_call.1} parent=1 // pred_check_branch
      %17 = sbr.rel (0) target = $region5
    $region4: #{tpu_custom_call.1} parent=1 // pred_region
      %s19 = ssub.s32 512, 512
      %20 = vsyncadd [#allocation3], %s19
      %s21 = sshll.u32 [#allocation2], 4
      %s22 = int_to_ptr.vmem [resolvable:$true] %s21
      %27 = dma.hbm_to_vmem [thread:$0]  %s0, 512, %s22, [#allocation3], 128, 128, 8
    $region5: #{tpu_custom_call.1} parent=1 // pred_fallthru
      _
    // Predicated region
    $region6: #{tpu_custom_call.1} parent=1 // pred_check
      _
    $region7: #{tpu_custom_call.1} parent=1 // pred_check_branch
      %29 = sbr.rel (0) target = $region9
    $region8: #{tpu_custom_call.1} parent=1 // pred_region
      %s31 = ssub.s32 1024, 1024
      %32 = vsyncadd [#allocation6], %s31
      %s33 = sshll.u32 [#allocation5], 4
      %s34 = int_to_ptr.vmem [resolvable:$true] %s33
      %39 = dma.hbm_to_vmem [thread:$0]  %s1, 1024, %s34, [#allocation6], 128, 128, 8
    $region9: #{tpu_custom_call.1} parent=1 // pred_fallthru
      _
    // Predicated region
    $region10: #{tpu_custom_call.1} parent=1 // pred_check
      _
    $region11: #{tpu_custom_call.1} parent=1 // pred_check_branch
      %41 = sbr.rel (0) target = $region13
    $region12: #{tpu_custom_call.1} parent=1 // pred_region
      _
    $region13: #{tpu_custom_call.1} parent=1 // pred_fallthru
      _
    // Predicated region
    $region14: #{tpu_custom_call.1} parent=1 // pred_check
      _
    $region15: #{tpu_custom_call.1} parent=1 // pred_check_branch
      %43 = sbr.rel (0) target = $region17
    $region16: #{tpu_custom_call.1} parent=1 // pred_region
      %s45 = ssub.s32 2048, 2048
      %46 = vsyncadd [#allocation6], %s45
      %s47 = sshll.u32 [#allocation7], 4
      %s48 = int_to_ptr.vmem [resolvable:$true] %s47
      %53 = dma.hbm_to_vmem [thread:$0]  %s3, 2048, %s48, [#allocation6], 64, 64, 4
    $region17: #{tpu_custom_call.1} parent=1 // pred_fallthru
      _
    // Predicated region
    $region18: #{tpu_custom_call.1} parent=1 // pred_check
      _
    $region19: #{tpu_custom_call.1} parent=1 // pred_check_branch
      %55 = sbr.rel (0) target = $region21
    $region20: #{tpu_custom_call.1} parent=1 // pred_region
      _
    $region21: #{tpu_custom_call.1} parent=1 // pred_fallthru
      _
    // Predicated region
    $region22: #{tpu_custom_call.1} parent=1 // pred_check
      _
    $region23: #{tpu_custom_call.1} parent=1 // pred_check_branch
      %57 = sbr.rel (0) target = $region25
    $region24: #{tpu_custom_call.1} parent=1 // pred_region
      %s59 = ssub.s32 1024, 1024
      %60 = vsyncadd [#allocation9], %s59
      %s61 = sshll.u32 [#allocation8], 4
      %s62 = int_to_ptr.vmem [resolvable:$true] %s61
      %67 = dma.hbm_to_vmem [thread:$0]  %s5, 1024, %s62, [#allocation9], 64, 64, 4
    $region25: #{tpu_custom_call.1} parent=1 // pred_fallthru
      _
    // Predicated region
    $region26: #{tpu_custom_call.1} parent=1 // pred_check
      _
    $region27: #{tpu_custom_call.1} parent=1 // pred_check_branch
      %69 = sbr.rel (0) target = $region29
    $region28: #{tpu_custom_call.1} parent=1 // pred_region
      _
    $region29: #{tpu_custom_call.1} parent=1 // pred_fallthru
      _
    // Predicated region
    $region30: #{tpu_custom_call.1} parent=1 // pred_check
      _
    $region31: #{tpu_custom_call.1} parent=1 // pred_check_branch
      %71 = sbr.rel (0) target = $region33
    $region32: #{tpu_custom_call.1} parent=1 // pred_region
      %72 = dma.done [#allocation3], 512
    $region33: #{tpu_custom_call.1} parent=1 // pred_fallthru
      _
    // Predicated region
    $region34: #{tpu_custom_call.1} parent=1 // pred_check
      _
    $region35: #{tpu_custom_call.1} parent=1 // pred_check_branch
      %74 = sbr.rel (0) target = $region37
    $region36: #{tpu_custom_call.1} parent=1 // pred_region
      %75 = dma.done [#allocation6], 1024
    $region37: #{tpu_custom_call.1} parent=1 // pred_fallthru
      _
    // Predicated region
    $region38: #{tpu_custom_call.1} parent=1 // pred_check
      _
    $region39: #{tpu_custom_call.1} parent=1 // pred_check_branch
      %77 = sbr.rel (0) target = $region41
    $region40: #{tpu_custom_call.1} parent=1 // pred_region
      %78 = dma.done [#allocation6], 2048
    $region41: #{tpu_custom_call.1} parent=1 // pred_fallthru
      _
    // Predicated region
    $region42: #{tpu_custom_call.1} parent=1 // pred_check
      _
    $region43: #{tpu_custom_call.1} parent=1 // pred_check_branch
      %80 = sbr.rel (0) target = $region45
    $region44: #{tpu_custom_call.1} parent=1 // pred_region
      %81 = dma.done [#allocation9], 1024
    $region45: #{tpu_custom_call.1} parent=1 // pred_fallthru
      _
    %v83 = vld [vmem:[#allocation2] sm:$0xff]
    %v84 = vld [vmem:[#allocation2 + $0x8] sm:$0xff]
    %v85 = vld [vmem:[#allocation2 + $0x10] sm:$0xff]
    %v86 = vld [vmem:[#allocation2 + $0x18] sm:$0xff]
    %v87 = vpack.c.bf16 %v84, %v83
    %v88 = vpack.c.bf16 %v86, %v85
    %v89 = vld [vmem:[#allocation5] sm:$0xff]
    %v90 = vld [vmem:[#allocation5 + $0x8] sm:$0xff]
    %v91 = vld [vmem:[#allocation5 + $0x10] sm:$0xff]
    %v92 = vld [vmem:[#allocation5 + $0x18] sm:$0xff]
    %v93 = vld [vmem:[#allocation5 + $0x20] sm:$0xff]
    %v94 = vld [vmem:[#allocation5 + $0x28] sm:$0xff]
    %v95 = vld [vmem:[#allocation5 + $0x30] sm:$0xff]
    %v96 = vld [vmem:[#allocation5 + $0x38] sm:$0xff]
    %v97 = vld [vmem:[%s2] sm:$0x3]
    %v99 = vlaneseq
    %v100 = vshrl.u32 %v99, 7
    %v101 = vsub.s32 0, %v100
    %v102 = vrot.slane %v97, %v101
    %v103 = vlaneseq
    %v104 = vshrl.u32 %v103, 7
    %v105 = vsub.s32 1, %v104
    %v106 = vrot.slane %v97, %v105
    %v117 = vunpack.c.l.b16 %v89
    %v118 = vunpack.c.h.b16 %v89
    %v119 = vunpack.c.l.b16 %v90
    %v120 = vunpack.c.h.b16 %v90
    %v121 = vunpack.c.l.b16 %v91
    %v122 = vunpack.c.h.b16 %v91
    %v123 = vunpack.c.l.b16 %v92
    %v124 = vunpack.c.h.b16 %v92
    %v125 = vunpack.c.l.b16 %v93
    %v126 = vunpack.c.h.b16 %v93
    %v127 = vunpack.c.l.b16 %v94
    %v128 = vunpack.c.h.b16 %v94
    %v129 = vunpack.c.l.b16 %v95
    %v130 = vunpack.c.h.b16 %v95
    %v131 = vunpack.c.l.b16 %v96
    %v132 = vunpack.c.h.b16 %v96
    %v133 = vpack.c.b16 %v119, %v117
    %v134 = vpack.c.b16 %v120, %v118
    %v135 = vpack.c.b16 %v123, %v121
    %v136 = vpack.c.b16 %v124, %v122
    %v137 = vpack.c.b16 %v127, %v125
    %v138 = vpack.c.b16 %v128, %v126
    %v139 = vpack.c.b16 %v131, %v129
    %v140 = vpack.c.b16 %v132, %v130
    %vm149 = vcmask 523264
    %v151 = vsel %vm149, %v87, 0
    %v154 = vsel %vm149, %v88, 0
    %156 = vmatprep.subr.bf16.mxu0 %v134
    %157 = vmatpush1.bf16.msra.mxu0 %v133
    %158 = vmatprep.subr.bf16.mxu0 %v136
    %159 = vmatpush1.bf16.msra.mxu0 %v135
    %160 = vmatprep.subr.bf16.mxu0 %v138
    %161 = vmatpush1.bf16.msra.mxu0 %v137
    %162 = vmatprep.subr.bf16.mxu0 %v140
    %163 = vmatpush1.bf16.msra.mxu0 %v139
    %164 = vmatprep.subr.bf16.mxu0 0
    %165 = vmatpush1.bf16.msra.mxu0 0
    %166 = vmatprep.subr.bf16.mxu0 0
    %167 = vmatpush1.bf16.msra.mxu0 0
    %168 = vmatprep.subr.bf16.mxu0 0
    %169 = vmatpush1.bf16.msra.mxu0 0
    %170 = vmatprep.subr.bf16.mxu0 0
    %171 = vmatpush1.bf16.msra.mxu0 0
    %172 = vmatprep.subr.bf16.mxu0 0
    %173 = vmatpush1.bf16.msra.mxu0 0
    %174 = vmatprep.subr.bf16.mxu0 0
    %175 = vmatpush1.bf16.msra.mxu0 0
    %176 = vmatprep.subr.bf16.mxu0 0
    %177 = vmatpush1.bf16.msra.mxu0 0
    %178 = vmatprep.subr.bf16.mxu0 0
    %179 = vmatpush1.bf16.msra.mxu0 0
    %180 = vmatprep.subr.bf16.mxu0 0
    %181 = vmatpush1.bf16.msra.mxu0 0
    %182 = vmatprep.subr.bf16.mxu0 0
    %183 = vmatpush1.bf16.msra.mxu0 0
    %184 = vmatprep.subr.bf16.mxu0 0
    %185 = vmatpush1.bf16.msra.mxu0 0
    %186 = vmatprep.subr.bf16.mxu0 0
    %187 = vmatpush1.bf16.msra.mxu0 0
    %188 = vmatprep.mubr.bf16.mxu0 0
    %189 = vmatmul.mubr.bf16.gmra.mrb[0].mxu0 %v151
    %v190 = vpop.f32.mrb[0].mxu0
    %v191 = vadd.f32 %v102, %v190
    %v192 = vpop.f32.mrb[0].mxu0
    %v193 = vadd.f32 %v106, %v192
    %v194 = vpop.f32.mrb[0].mxu0
    %v195 = vadd.f32 %v102, %v194
    %v196 = vpop.f32.mrb[0].mxu0
    %v197 = vadd.f32 %v106, %v196
    %198 = vmatprep.mubr.bf16.mxu0 0
    %199 = vmatmul.mubr.bf16.gmra.mrb[0].mxu0 %v154
    %v200 = vpop.f32.mrb[0].mxu0
    %v201 = vadd.f32 %v102, %v200
    %v202 = vpop.f32.mrb[0].mxu0
    %v203 = vadd.f32 %v106, %v202
    %v204 = vpop.f32.mrb[0].mxu0
    %v205 = vadd.f32 %v102, %v204
    %v206 = vpop.f32.mrb[0].mxu0
    %v207 = vadd.f32 %v106, %v206
    %208 = vdwg.mxu0
    %v209 = vmax.f32 %v191, 0.0
    %v210 = vmax.f32 %v193, 0.0
    %v211 = vmax.f32 %v195, 0.0
    %v212 = vmax.f32 %v197, 0.0
    %v213 = vmax.f32 %v201, 0.0
    %v214 = vmax.f32 %v203, 0.0
    %v215 = vmax.f32 %v205, 0.0
    %v216 = vmax.f32 %v207, 0.0
    %v217 = vpack.c.bf16 %v211, %v209
    %v218 = vpack.c.bf16 %v212, %v210
    %v219 = vpack.c.bf16 %v215, %v213
    %v220 = vpack.c.bf16 %v216, %v214
    %v221 = vld [vmem:[#allocation7] sm:$0xf]
    %v222 = vld [vmem:[#allocation7 + $0x4] sm:$0xf]
    %v223 = vld [vmem:[#allocation7 + $0x8] sm:$0xf]
    %v224 = vld [vmem:[#allocation7 + $0xc] sm:$0xf]
    %v225 = vld [vmem:[#allocation7 + $0x10] sm:$0xf]
    %v226 = vld [vmem:[#allocation7 + $0x14] sm:$0xf]
    %v227 = vld [vmem:[#allocation7 + $0x18] sm:$0xf]
    %v228 = vld [vmem:[#allocation7 + $0x1c] sm:$0xf]
    %v229 = vld [vmem:[#allocation7 + $0x20] sm:$0xf]
    %v230 = vld [vmem:[#allocation7 + $0x24] sm:$0xf]
    %v231 = vld [vmem:[#allocation7 + $0x28] sm:$0xf]
    %v232 = vld [vmem:[#allocation7 + $0x2c] sm:$0xf]
    %v233 = vld [vmem:[#allocation7 + $0x30] sm:$0xf]
    %v234 = vld [vmem:[#allocation7 + $0x34] sm:$0xf]
    %v235 = vld [vmem:[#allocation7 + $0x38] sm:$0xf]
    %v236 = vld [vmem:[#allocation7 + $0x3c] sm:$0xf]
    %v237 = vld [vmem:[#allocation7 + $0x40] sm:$0xf]
    %v238 = vld [vmem:[#allocation7 + $0x44] sm:$0xf]
    %v239 = vld [vmem:[#allocation7 + $0x48] sm:$0xf]
    %v240 = vld [vmem:[#allocation7 + $0x4c] sm:$0xf]
    %v241 = vld [vmem:[#allocation7 + $0x50] sm:$0xf]
    %v242 = vld [vmem:[#allocation7 + $0x54] sm:$0xf]
    %v243 = vld [vmem:[#allocation7 + $0x58] sm:$0xf]
    %v244 = vld [vmem:[#allocation7 + $0x5c] sm:$0xf]
    %v245 = vld [vmem:[#allocation7 + $0x60] sm:$0xf]
    %v246 = vld [vmem:[#allocation7 + $0x64] sm:$0xf]
    %v247 = vld [vmem:[#allocation7 + $0x68] sm:$0xf]
    %v248 = vld [vmem:[#allocation7 + $0x6c] sm:$0xf]
    %v249 = vld [vmem:[#allocation7 + $0x70] sm:$0xf]
    %v250 = vld [vmem:[#allocation7 + $0x74] sm:$0xf]
    %v251 = vld [vmem:[#allocation7 + $0x78] sm:$0xf]
    %v252 = vld [vmem:[#allocation7 + $0x7c] sm:$0xf]
    %v253 = vld [vmem:[%s4] sm:$0x1]
    %v255 = vlaneseq
    %v256 = vshrl.u32 %v255, 7
    %v257 = vsub.s32 0, %v256
    %v258 = vrot.slane %v253, %v257
    %v292 = vunpack.c.l.b16 %v221
    %v293 = vunpack.c.l.b16 %v222
    %v294 = vunpack.c.l.b16 %v223
    %v295 = vunpack.c.l.b16 %v224
    %v296 = vunpack.c.l.b16 %v225
    %v297 = vunpack.c.l.b16 %v226
    %v298 = vunpack.c.l.b16 %v227
    %v299 = vunpack.c.l.b16 %v228
    %v300 = vunpack.c.l.b16 %v229
    %v301 = vunpack.c.l.b16 %v230
    %v302 = vunpack.c.l.b16 %v231
    %v303 = vunpack.c.l.b16 %v232
    %v304 = vunpack.c.l.b16 %v233
    %v305 = vunpack.c.l.b16 %v234
    %v306 = vunpack.c.l.b16 %v235
    %v307 = vunpack.c.l.b16 %v236
    %v308 = vunpack.c.l.b16 %v237
    %v309 = vunpack.c.l.b16 %v238
    %v310 = vunpack.c.l.b16 %v239
    %v311 = vunpack.c.l.b16 %v240
    %v312 = vunpack.c.l.b16 %v241
    %v313 = vunpack.c.l.b16 %v242
    %v314 = vunpack.c.l.b16 %v243
    %v315 = vunpack.c.l.b16 %v244
    %v316 = vunpack.c.l.b16 %v245
    %v317 = vunpack.c.l.b16 %v246
    %v318 = vunpack.c.l.b16 %v247
    %v319 = vunpack.c.l.b16 %v248
    %v320 = vunpack.c.l.b16 %v249
    %v321 = vunpack.c.l.b16 %v250
    %v322 = vunpack.c.l.b16 %v251
    %v323 = vunpack.c.l.b16 %v252
    %v324 = vpack.c.b16 %v293, %v292
    %v325 = vpack.c.b16 %v295, %v294
    %v326 = vpack.c.b16 %v297, %v296
    %v327 = vpack.c.b16 %v299, %v298
    %v328 = vpack.c.b16 %v301, %v300
    %v329 = vpack.c.b16 %v303, %v302
    %v330 = vpack.c.b16 %v305, %v304
    %v331 = vpack.c.b16 %v307, %v306
    %v332 = vpack.c.b16 %v309, %v308
    %v333 = vpack.c.b16 %v311, %v310
    %v334 = vpack.c.b16 %v313, %v312
    %v335 = vpack.c.b16 %v315, %v314
    %v336 = vpack.c.b16 %v317, %v316
    %v337 = vpack.c.b16 %v319, %v318
    %v338 = vpack.c.b16 %v321, %v320
    %v339 = vpack.c.b16 %v323, %v322
    %356 = vmatprep.subr.bf16.mxu0 0
    %357 = vmatpush1.bf16.msra.mxu0 %v324
    %358 = vmatprep.subr.bf16.mxu0 0
    %359 = vmatpush1.bf16.msra.mxu0 %v325
    %360 = vmatprep.subr.bf16.mxu0 0
    %361 = vmatpush1.bf16.msra.mxu0 %v326
    %362 = vmatprep.subr.bf16.mxu0 0
    %363 = vmatpush1.bf16.msra.mxu0 %v327
    %364 = vmatprep.subr.bf16.mxu0 0
    %365 = vmatpush1.bf16.msra.mxu0 %v328
    %366 = vmatprep.subr.bf16.mxu0 0
    %367 = vmatpush1.bf16.msra.mxu0 %v329
    %368 = vmatprep.subr.bf16.mxu0 0
    %369 = vmatpush1.bf16.msra.mxu0 %v330
    %370 = vmatprep.subr.bf16.mxu0 0
    %371 = vmatpush1.bf16.msra.mxu0 %v331
    %372 = vmatprep.subr.bf16.mxu0 0
    %373 = vmatpush1.bf16.msra.mxu0 %v332
    %374 = vmatprep.subr.bf16.mxu0 0
    %375 = vmatpush1.bf16.msra.mxu0 %v333
    %376 = vmatprep.subr.bf16.mxu0 0
    %377 = vmatpush1.bf16.msra.mxu0 %v334
    %378 = vmatprep.subr.bf16.mxu0 0
    %379 = vmatpush1.bf16.msra.mxu0 %v335
    %380 = vmatprep.subr.bf16.mxu0 0
    %381 = vmatpush1.bf16.msra.mxu0 %v336
    %382 = vmatprep.subr.bf16.mxu0 0
    %383 = vmatpush1.bf16.msra.mxu0 %v337
    %384 = vmatprep.subr.bf16.mxu0 0
    %385 = vmatpush1.bf16.msra.mxu0 %v338
    %386 = vmatprep.subr.bf16.mxu0 0
    %387 = vmatpush1.bf16.msra.mxu0 %v339
    %388 = vmatprep.mubr.bf16.mxu0 %v218
    %389 = vmatmul.mubr.bf16.gmra.mrb[0].mxu0 %v217
    %v390 = vpop.f32.mrb[0].mxu0
    %v391 = vadd.f32 %v258, %v390
    %v392 = vpop.f32.mrb[0].mxu0
    %v393 = vpop.f32.mrb[0].mxu0
    %v394 = vadd.f32 %v258, %v393
    %v395 = vpop.f32.mrb[0].mxu0
    %396 = vmatprep.mubr.bf16.mxu0 %v220
    %397 = vmatmul.mubr.bf16.gmra.mrb[0].mxu0 %v219
    %v398 = vpop.f32.mrb[0].mxu0
    %v399 = vadd.f32 %v258, %v398
    %v400 = vpop.f32.mrb[0].mxu0
    %v401 = vpop.f32.mrb[0].mxu0
    %v402 = vadd.f32 %v258, %v401
    %v403 = vpop.f32.mrb[0].mxu0
    %404 = vdwg.mxu0
    %v405 = vmax.f32 %v391, 0.0
    %v406 = vmax.f32 %v394, 0.0
    %v407 = vmax.f32 %v399, 0.0
    %v408 = vmax.f32 %v402, 0.0
    %v409 = vpack.c.bf16 %v406, %v405
    %v410 = vpack.c.bf16 %v408, %v407
    %v411 = vld [vmem:[#allocation8] sm:$0xf]
    %v412 = vld [vmem:[#allocation8 + $0x4] sm:$0xf]
    %v413 = vld [vmem:[#allocation8 + $0x8] sm:$0xf]
    %v414 = vld [vmem:[#allocation8 + $0xc] sm:$0xf]
    %v415 = vld [vmem:[#allocation8 + $0x10] sm:$0xf]
    %v416 = vld [vmem:[#allocation8 + $0x14] sm:$0xf]
    %v417 = vld [vmem:[#allocation8 + $0x18] sm:$0xf]
    %v418 = vld [vmem:[#allocation8 + $0x1c] sm:$0xf]
    %v419 = vld [vmem:[#allocation8 + $0x20] sm:$0xf]
    %v420 = vld [vmem:[#allocation8 + $0x24] sm:$0xf]
    %v421 = vld [vmem:[#allocation8 + $0x28] sm:$0xf]
    %v422 = vld [vmem:[#allocation8 + $0x2c] sm:$0xf]
    %v423 = vld [vmem:[#allocation8 + $0x30] sm:$0xf]
    %v424 = vld [vmem:[#allocation8 + $0x34] sm:$0xf]
    %v425 = vld [vmem:[#allocation8 + $0x38] sm:$0xf]
    %v426 = vld [vmem:[#allocation8 + $0x3c] sm:$0xf]
    %v427 = vld [vmem:[%s6] sm:$0x1]
    %v429 = vlaneseq
    %v430 = vshrl.u32 %v429, 7
    %v431 = vsub.s32 0, %v430
    %v432 = vrot.slane %v427, %v431
    %v450 = vunpack.c.l.b16 %v411
    %v451 = vunpack.c.l.b16 %v412
    %v452 = vunpack.c.l.b16 %v413
    %v453 = vunpack.c.l.b16 %v414
    %v454 = vunpack.c.l.b16 %v415
    %v455 = vunpack.c.l.b16 %v416
    %v456 = vunpack.c.l.b16 %v417
    %v457 = vunpack.c.l.b16 %v418
    %v458 = vunpack.c.l.b16 %v419
    %v459 = vunpack.c.l.b16 %v420
    %v460 = vunpack.c.l.b16 %v421
    %v461 = vunpack.c.l.b16 %v422
    %v462 = vunpack.c.l.b16 %v423
    %v463 = vunpack.c.l.b16 %v424
    %v464 = vunpack.c.l.b16 %v425
    %v465 = vunpack.c.l.b16 %v426
    %v466 = vpack.c.b16 %v451, %v450
    %v467 = vpack.c.b16 %v453, %v452
    %v468 = vpack.c.b16 %v455, %v454
    %v469 = vpack.c.b16 %v457, %v456
    %v470 = vpack.c.b16 %v459, %v458
    %v471 = vpack.c.b16 %v461, %v460
    %v472 = vpack.c.b16 %v463, %v462
    %v473 = vpack.c.b16 %v465, %v464
    %482 = vmatprep.subr.bf16.mxu0 0
    %483 = vmatpush1.bf16.msra.mxu0 %v466
    %484 = vmatprep.subr.bf16.mxu0 0
    %485 = vmatpush1.bf16.msra.mxu0 %v467
    %486 = vmatprep.subr.bf16.mxu0 0
    %487 = vmatpush1.bf16.msra.mxu0 %v468
    %488 = vmatprep.subr.bf16.mxu0 0
    %489 = vmatpush1.bf16.msra.mxu0 %v469
    %490 = vmatprep.subr.bf16.mxu0 0
    %491 = vmatpush1.bf16.msra.mxu0 %v470
    %492 = vmatprep.subr.bf16.mxu0 0
    %493 = vmatpush1.bf16.msra.mxu0 %v471
    %494 = vmatprep.subr.bf16.mxu0 0
    %495 = vmatpush1.bf16.msra.mxu0 %v472
    %496 = vmatprep.subr.bf16.mxu0 0
    %497 = vmatpush1.bf16.msra.mxu0 %v473
    %498 = vmatprep.subr.bf16.mxu0 0
    %499 = vmatpush1.bf16.msra.mxu0 0
    %500 = vmatprep.subr.bf16.mxu0 0
    %501 = vmatpush1.bf16.msra.mxu0 0
    %502 = vmatprep.subr.bf16.mxu0 0
    %503 = vmatpush1.bf16.msra.mxu0 0
    %504 = vmatprep.subr.bf16.mxu0 0
    %505 = vmatpush1.bf16.msra.mxu0 0
    %506 = vmatprep.subr.bf16.mxu0 0
    %507 = vmatpush1.bf16.msra.mxu0 0
    %508 = vmatprep.subr.bf16.mxu0 0
    %509 = vmatpush1.bf16.msra.mxu0 0
    %510 = vmatprep.subr.bf16.mxu0 0
    %511 = vmatpush1.bf16.msra.mxu0 0
    %512 = vmatprep.subr.bf16.mxu0 0
    %513 = vmatpush1.bf16.msra.mxu0 0
    %514 = vmatprep.mubr.bf16.mxu0 0
    %515 = vmatmul.mubr.bf16.gmra.mrb[0].mxu0 %v409
    %v516 = vpop.f32.mrb[0].mxu0
    %v517 = vadd.f32 %v432, %v516
    %v518 = vpop.f32.mrb[0].mxu0
    %v519 = vpop.f32.mrb[0].mxu0
    %v520 = vadd.f32 %v432, %v519
    %v521 = vpop.f32.mrb[0].mxu0
    %522 = vmatprep.mubr.bf16.mxu0 0
    %523 = vmatmul.mubr.bf16.gmra.mrb[0].mxu0 %v410
    %v524 = vpop.f32.mrb[0].mxu0
    %v525 = vadd.f32 %v432, %v524
    %v526 = vpop.f32.mrb[0].mxu0
    %v527 = vpop.f32.mrb[0].mxu0
    %v528 = vadd.f32 %v432, %v527
    %v529 = vpop.f32.mrb[0].mxu0
    %530 = vdwg.mxu0
    %531 = vst [vmem:[#allocation10] sm:$0xff] %v517
    %532 = vst [vmem:[#allocation10 + $0x8] sm:$0xff] %v520
    %533 = vst [vmem:[#allocation10 + $0x10] sm:$0xff] %v525
    %534 = vst [vmem:[#allocation10 + $0x18] sm:$0xff] %v528
    // Predicated region
    $region46: #{tpu_custom_call.1} parent=1 // pred_check
      _
    $region47: #{tpu_custom_call.1} parent=1 // pred_check_branch
      %536 = sbr.rel (0) target = $region49
    $region48: #{tpu_custom_call.1} parent=1 // pred_region
      %s538 = ssub.s32 512, 512
      %539 = vsyncadd [#allocation4], %s538
      %s540 = sshll.u32 [#allocation10], 4
      %s541 = int_to_ptr.vmem [resolvable:$true] %s540
      %546 = dma.vmem_to_hbm [thread:$0]  %s541, 512, %s7, [#allocation4], 128, 128, 8
    $region49: #{tpu_custom_call.1} parent=1 // pred_fallthru
      _
    // Predicated region
    $region50: #{tpu_custom_call.1} parent=1 // pred_check
      _
    $region51: #{tpu_custom_call.1} parent=1 // pred_check_branch
      %548 = sbr.rel (0) target = $region53
    $region52: #{tpu_custom_call.1} parent=1 // pred_region
      %549 = dma.done [#allocation4], 512
    $region53: #{tpu_custom_call.1} parent=1 // pred_fallthru
      _
    %550 = vsyncpa [#allocation3], 1
    %551 = vsyncpa [#allocation6], 1
    %552 = vsyncpa [#allocation9], 1
    %553 = vsyncpa [#allocation4], 1

</llo_original>
